<compile_context>
chip_gen: v6e
topology: v6e:2x2x1
jax: 0.10.0
libtpu: 0.0.40
codegen_flags: <defaults>
</compile_context>

<pallas_src>
import math
from functools import partial

import jax
import jax.numpy as jnp
import numpy as np
from jax.experimental import pallas as pl
from jax.experimental.pallas import tpu as pltpu


def _augment_kernel(zt_ref, mean_ref, inv_two_var_ref, const_ref, z_ref, ldj_ref):
    # Rows-on-lanes layout: tiles are (z_dim, tn), tn a multiple of 128 (lane-dense).
    zt = zt_ref[...]                           # (z_dim, tn); HBM buffer aliased with z_ref

    # z = concat([x, e]) was stacked once by the wrapper: single full-tile pass-through
    # store (one unmasked vst stream -> fine on v5e's single vector-store slot).
    z_ref[...] = zt

    # ldj = -sum(log_prob(e)) = sum((e-mean)^2 / (2*scale^2)) + sum(log scale) + A/2*log(2*pi)
    # mean_full / inv_two_var_full carry zeros on the x sublanes, so the x rows contribute
    # exactly 0 and no sublane slicing is needed.  Accumulate in f32 (bf16-safe).
    ztf = zt.astype(jnp.float32)
    diff = ztf - mean_ref[...]                 # (z_dim, tn) - (z_dim, 1) lane-broadcast
    ldj = jnp.sum(diff * diff * inv_two_var_ref[...], axis=0, keepdims=True) + const_ref[0]
    ldj_ref[...] = ldj.astype(ldj_ref.dtype)   # (1, tn), lane-dense store


def _round_up(v, m):
    return -(-v // m) * m


def _num_tensorcores():
    """2 on v7x (2 TensorCores/chip), else 1 (v5e/v6e)."""
    try:
        kind = jax.devices()[0].device_kind.lower()
        if "v7" in kind:
            return 2
    except Exception:
        pass
    return 1


def _pick_tn(rows, target):
    """Lane-tile size: multiple of 128, <= target.

    v5e/v6e (1 TC): one maximal tile — splitting buys no parallelism, only per-step overhead.
    v7x (2 TCs):    >= 2 parallel grid steps so both cores get work, each step still large.
    """
    target = max(128, _round_up(target, 128))
    rows128 = _round_up(rows, 128)
    if _num_tensorcores() >= 2 and rows128 >= 256:
        per_core = _round_up(pl.cdiv(rows128, 2), 128)
        return min(target, per_core)
    return min(target, rows128)


@partial(jax.jit, static_argnames=("tn_target", "min_rows_for_pallas",
                                   "force_pallas", "transposed_output"))
def augment_vflow_forward(x, e, aug_dist_mean, aug_dist_scale, *,
                          tn_target=32768, min_rows_for_pallas=2048,
                          force_pallas=False, transposed_output=False):
    """x: (..., input_size); e: (..., aug_size) pre-sampled Normal(mean, scale) noise.

    Returns (z, ldj) with z = concat([x, e], -1) and ldj = -sum(log_prob(e), -1).
    With transposed_output=True the Pallas path returns z as (z_dim, rows) (lane-dense
    layout, no final transpose) and ldj as (rows,), so callers can keep that layout.
    """
    lead = x.shape[:-1]
    input_size = x.shape[-1]
    aug_size = e.shape[-1]
    z_dim = input_size + aug_size
    rows = int(np.prod(lead)) if lead else 1
    dtype = x.dtype

    meanf = aug_dist_mean.astype(jnp.float32).reshape(aug_size)
    scalef = aug_dist_scale.astype(jnp.float32).reshape(aug_size)
    log_norm_const = jnp.sum(jnp.log(scalef)) + 0.5 * aug_size * math.log(2.0 * math.pi)

    if not force_pallas and rows < min_rows_for_pallas:
        # Plain-JAX fast path: at small batch*time the pallas_call fixed cost exceeds
        # what XLA's fused concat/reduce does directly (perf-review recommendation).
        z = jnp.concatenate([x, e.astype(dtype)], axis=-1)
        ef = e.astype(jnp.float32)
        ldj = (jnp.sum((ef - meanf) ** 2 * (0.5 / (scalef * scalef)), axis=-1)
               + log_norm_const).astype(dtype)
        return z, ldj

    # --- Pallas path -------------------------------------------------------------
    # Stack z once in rows-on-lanes layout: zT[f, r] == z[r, f].  This is the only
    # tensor the kernel touches; it is aliased to the z output, so the kernel does not
    # re-read x/e as separate sublane-padded tiles.
    x2 = x.reshape(rows, input_size)
    e2 = e.astype(dtype).reshape(rows, aug_size)
    zT = jnp.concatenate([x2.T, e2.T], axis=0)                 # (z_dim, rows)

    tn = _pick_tn(rows, tn_target)
    grid = pl.cdiv(rows, tn)        # no explicit padding; Pallas masks the partial tile

    # Hoisted Gaussian constants, zero-padded over the x sublanes.
    zeros_x = jnp.zeros((input_size,), jnp.float32)
    mean_full = jnp.concatenate([zeros_x, meanf]).reshape(z_dim, 1)
    inv_two_var_full = jnp.concatenate([zeros_x, 0.5 / (scalef * scalef)]).reshape(z_dim, 1)
    const = log_norm_const.reshape(1).astype(jnp.float32)

    zT_out, ldj2 = pl.pallas_call(
        _augment_kernel,
        out_shape=(
            jax.ShapeDtypeStruct((z_dim, rows), dtype),
            jax.ShapeDtypeStruct((1, rows), dtype),
        ),
        grid_spec=pltpu.PrefetchScalarGridSpec(
            num_scalar_prefetch=0,
            grid=(grid,),
            in_specs=[
                pl.BlockSpec((z_dim, tn), lambda i: (0, i)),          # aliased z tile
                pl.BlockSpec((z_dim, 1), lambda i: (0, 0)),           # resident constant
                pl.BlockSpec((z_dim, 1), lambda i: (0, 0)),           # resident constant
                pl.BlockSpec(memory_space=pltpu.MemorySpace.SMEM),    # scalar constant
            ],
            out_specs=[
                pl.BlockSpec((z_dim, tn), lambda i: (0, i)),
                pl.BlockSpec((1, tn), lambda i: (0, i)),
            ],
        ),
        input_output_aliases={0: 0},    # zT donated & reused as the z output HBM buffer
        compiler_params=pltpu.CompilerParams(dimension_semantics=("parallel",)),
    )(zT, mean_full, inv_two_var_full, const)

    if transposed_output:
        return zT_out, ldj2.reshape(rows)
    z = zT_out.T.reshape(*lead, z_dim)
    ldj = ldj2.reshape(lead)
    return z, ldj


def augment_vflow(x, key, aug_dist_mean, aug_dist_scale, **kw):
    """Full module forward: samples e ~ Normal(mean, scale) with sample_shape=x.shape[:-1]."""
    aug_size = aug_dist_mean.shape[-1]
    noise = jax.random.normal(key, (*x.shape[:-1], aug_size), jnp.float32)
    e = (aug_dist_mean + aug_dist_scale * noise).astype(x.dtype)
    return augment_vflow_forward(x, e, aug_dist_mean, aug_dist_scale, **kw)


def _reference(x, e, mean, scale):
    log_prob = (-((e - mean) ** 2) / (2.0 * scale ** 2)
                - jnp.log(scale) - 0.5 * jnp.log(2.0 * jnp.pi))
    return jnp.concatenate([x, e], axis=-1), -jnp.sum(log_prob, axis=-1)


if __name__ == "__main__":
    # Module config (small, consistent with trajectory-forecasting usage).
    input_size = 2
    aug_size = 6

    # Deterministic "buffers" from __init__: zeros mean, ones scale.
    aug_dist_mean = jnp.zeros((aug_size,), jnp.float32)
    aug_dist_scale = jnp.ones((aug_size,), jnp.float32)

    key = jax.random.PRNGKey(0)
    kx, ke, kx2, ke2 = jax.random.split(key, 4)

    # 1) Small shape forced through the Pallas path (single partial lane tile).
    B, T = 2, 8
    x = jax.random.normal(kx, (B, T, input_size), jnp.float32)
    e = aug_dist_mean + aug_dist_scale * jax.random.normal(ke, (B, T, aug_size), jnp.float32)
    z, ldj = augment_vflow_forward(x, e, aug_dist_mean, aug_dist_scale, force_pallas=True)
    jax.block_until_ready((z, ldj))
    z_ref, ldj_ref = _reference(x, e, aug_dist_mean, aug_dist_scale)
    assert z.shape == (B, T, input_size + aug_size) and ldj.shape == (B, T)
    np.testing.assert_allclose(np.asarray(z), np.asarray(z_ref), rtol=1e-6, atol=1e-6)
    np.testing.assert_allclose(np.asarray(ldj), np.asarray(ldj_ref), rtol=1e-5, atol=1e-5)

    # 2) Pallas path with a masked partial last tile (500 rows, no explicit padding,
    #    multi-step "parallel" grid on v7x).
    B2, T2 = 5, 100
    x2 = jax.random.normal(kx2, (B2, T2, input_size), jnp.float32)
    e2 = aug_dist_mean + aug_dist_scale * jax.random.normal(ke2, (B2, T2, aug_size), jnp.float32)
    z2, ldj2 = augment_vflow_forward(x2, e2, aug_dist_mean, aug_dist_scale, force_pallas=True)
    jax.block_until_ready((z2, ldj2))
    z2_ref, ldj2_ref = _reference(x2, e2, aug_dist_mean, aug_dist_scale)
    np.testing.assert_allclose(np.asarray(z2), np.asarray(z2_ref), rtol=1e-6, atol=1e-6)
    np.testing.assert_allclose(np.asarray(ldj2), np.asarray(ldj2_ref), rtol=1e-5, atol=1e-5)

    # 3) Default dispatch at small shapes uses the plain-JAX fast path (perf feedback).
    z3, ldj3 = augment_vflow_forward(x, e, aug_dist_mean, aug_dist_scale)
    jax.block_until_ready((z3, ldj3))
    np.testing.assert_allclose(np.asarray(z3), np.asarray(z_ref), rtol=1e-6, atol=1e-6)
    np.testing.assert_allclose(np.asarray(ldj3), np.asarray(ldj_ref), rtol=1e-5, atol=1e-5)

    # 4) Full module forward (samples e internally, like torch's aug_dist.sample()).
    z4, ldj4 = augment_vflow(x, jax.random.PRNGKey(1), aug_dist_mean, aug_dist_scale)
    jax.block_until_ready((z4, ldj4))
    assert z4.shape == (B, T, input_size + aug_size) and ldj4.shape == (B, T)

    print("KERNEL_OK")
</pallas_src>

<mosaic_0001>
module attributes {stable_mosaic.version = 11 : i64} {
  func.func @_augment_kernel(%arg0: i32, %arg1: memref<8x128xf32, #tpu.memory_space<vmem>>, %arg2: memref<8x1xf32, #tpu.memory_space<vmem>>, %arg3: memref<8x1xf32, #tpu.memory_space<vmem>>, %arg4: memref<1xf32, #tpu.memory_space<smem>>, %arg5: memref<8x128xf32, #tpu.memory_space<vmem>>, %arg6: memref<1x128xf32, #tpu.memory_space<vmem>>) attributes {dimension_semantics = [#tpu.dimension_semantics<parallel>], iteration_bounds = array<i64: 1>, scalar_prefetch = 0 : i64, scratch_operands = 0 : i64, tpu.core_type = #tpu.core_type<tc>, window_params = [{transform_indices = @transform_0, window_bounds = array<i64: 8, 128>}, {pipeline_mode = #tpu.pipeline_mode<synchronous>, transform_indices = @transform_1, window_bounds = array<i64: 8, 1>}, {pipeline_mode = #tpu.pipeline_mode<synchronous>, transform_indices = @transform_2, window_bounds = array<i64: 8, 1>}, {transform_indices = @transform_3, window_bounds = array<i64: 1>}, {transform_indices = @transform_4, window_bounds = array<i64: 8, 128>}, {transform_indices = @transform_5, window_bounds = array<i64: 1, 128>}]} {
    %c0 = arith.constant 0 : index
    %c0_0 = arith.constant 0 : index
    %0 = vector.load %arg1[%c0, %c0_0] : memref<8x128xf32, #tpu.memory_space<vmem>>, vector<8x128xf32>
    %c0_1 = arith.constant 0 : index
    %c0_2 = arith.constant 0 : index
    %1 = vector.load %arg5[%c0_1, %c0_2] : memref<8x128xf32, #tpu.memory_space<vmem>>, vector<8x128xf32>
    tpu.vector_store %arg5[%c0_1, %c0_2], %0 {strides = array<i32>} : memref<8x128xf32, #tpu.memory_space<vmem>>, vector<8x128xf32>,
    %c0_3 = arith.constant 0 : index
    %c0_4 = arith.constant 0 : index
    %2 = vector.load %arg2[%c0_3, %c0_4] : memref<8x1xf32, #tpu.memory_space<vmem>>, vector<8x1xf32>
    %3 = vector.broadcast %2 : vector<8x1xf32> to vector<8x128xf32>
    %4 = arith.subf %0, %3 : vector<8x128xf32>
    %5 = arith.mulf %4, %4 : vector<8x128xf32>
    %c0_5 = arith.constant 0 : index
    %c0_6 = arith.constant 0 : index
    %6 = vector.load %arg3[%c0_5, %c0_6] : memref<8x1xf32, #tpu.memory_space<vmem>>, vector<8x1xf32>
    %7 = vector.broadcast %6 : vector<8x1xf32> to vector<8x128xf32>
    %8 = arith.mulf %5, %7 : vector<8x128xf32>
    %cst = arith.constant dense<0.000000e+00> : vector<128xf32>
    %9 = vector.multi_reduction <add>, %8, %cst [0] : vector<8x128xf32> to vector<128xf32>
    %10 = vector.shape_cast %9 : vector<128xf32> to vector<1x128xf32>
    %c0_7 = arith.constant 0 : index
    %11 = memref.load %arg4[%c0_7] : memref<1xf32, #tpu.memory_space<smem>>
    %12 = vector.broadcast %11 : f32 to vector<1x128xf32>
    %13 = arith.addf %10, %12 : vector<1x128xf32>
    %c0_8 = arith.constant 0 : index
    %c0_9 = arith.constant 0 : index
    %14 = vector.load %arg6[%c0_8, %c0_9] : memref<1x128xf32, #tpu.memory_space<vmem>>, vector<1x128xf32>
    tpu.vector_store %arg6[%c0_8, %c0_9], %13 {strides = array<i32>} : memref<1x128xf32, #tpu.memory_space<vmem>>, vector<1x128xf32>,
    return
  }
  func.func @transform_0(%arg0: i32) -> (i32, i32) {
    %c0_i32 = arith.constant 0 : i32
    %c0_i32_0 = arith.constant 0 : i32
    return %c0_i32, %arg0 : i32, i32
  }
  func.func @transform_1(%arg0: i32) -> (i32, i32) {
    %c0_i32 = arith.constant 0 : i32
    %c0_i32_0 = arith.constant 0 : i32
    %c0_i32_1 = arith.constant 0 : i32
    return %c0_i32, %c0_i32_0 : i32, i32
  }
  func.func @transform_2(%arg0: i32) -> (i32, i32) {
    %c0_i32 = arith.constant 0 : i32
    %c0_i32_0 = arith.constant 0 : i32
    %c0_i32_1 = arith.constant 0 : i32
    return %c0_i32, %c0_i32_0 : i32, i32
  }
  func.func @transform_3(%arg0: i32) -> i32 {
    %c0_i32 = arith.constant 0 : i32
    %c0_i32_0 = arith.constant 0 : i32
    return %c0_i32 : i32
  }
  func.func @transform_4(%arg0: i32) -> (i32, i32) {
    %c0_i32 = arith.constant 0 : i32
    %c0_i32_0 = arith.constant 0 : i32
    return %c0_i32, %arg0 : i32, i32
  }
  func.func @transform_5(%arg0: i32) -> (i32, i32) {
    %c0_i32 = arith.constant 0 : i32
    %c0_i32_0 = arith.constant 0 : i32
    return %c0_i32, %arg0 : i32, i32
  }
}

</mosaic_0001>

<llo_original>
// kernel: augment_vflow_forward.1
$region0: #{augment_vflow_forward.1}
  #allocation0 [shape = 'u32[]', space=smem, size = 0x4, offset = 0x4, fixed_abs, tag = 'smem constant byte address 0x4 - core index']
  #allocation1 [shape = 'u32[144,128]{1,0:T(1,128)}', space=vmem, size = 0x12000, scoped, tag = 'internal scratch']
  #allocation2 [shape = 'f32[1]{0:T(128)S(6)}', space=smem, size = 0x200, scoped, tag = 'scoped memory for augment_vflow_forward.1']
  %s0 = inlined_call_operand.vmem [shape: f32[8,16], index: 0, kind: input, shape index: {}, may-alias: {0,4}]
  %s1 = inlined_call_operand.vmem [shape: f32[8,1], index: 1, kind: input, shape index: {}]
  %s2 = inlined_call_operand.vmem [shape: f32[8,1], index: 2, kind: input, shape index: {}]
  %s3 = inlined_call_operand.<no memory space> [shape: f32[1], index: 3, kind: input, shape index: {}]
  %s4 = inlined_call_operand.vmem [shape: f32[8,16], index: 4, kind: output, shape index: {0}, may-alias: {0,4}]
  %s5 = inlined_call_operand.vmem [shape: f32[1,16], index: 5, kind: output, shape index: {1}]
  %6 = xla_tuple %s4, %s5
  %s7 = sld [smem:[#allocation0]]
  $region34: #{augment_vflow_forward.1} parent=0
    _
  %s9 = ssub.s32 1, %s7
  %s10 = scalar_select 0, %s9, %s7
  %11 = sst [smem:[#allocation2]] %s3
  // Predicated region
  $region2: #{augment_vflow_forward.1} parent=0 // pred_check
    _
  $region3: #{augment_vflow_forward.1} parent=0 // pred_check_branch
    %13 = sbr.rel (0) target = $region5
  $region4: #{augment_vflow_forward.1} parent=0 // pred_region
    _
  $region5: #{augment_vflow_forward.1} parent=0 // pred_fallthru
    _
  // Predicated region
  $region6: #{augment_vflow_forward.1} parent=0 // pred_check
    _
  $region7: #{augment_vflow_forward.1} parent=0 // pred_check_branch
    %15 = sbr.rel (0) target = $region9
  $region8: #{augment_vflow_forward.1} parent=0 // pred_region
    _
  $region9: #{augment_vflow_forward.1} parent=0 // pred_fallthru
    _
  // Predicated region
  $region10: #{augment_vflow_forward.1} parent=0 // pred_check
    _
  $region11: #{augment_vflow_forward.1} parent=0 // pred_check_branch
    %17 = sbr.rel (0) target = $region13
  $region12: #{augment_vflow_forward.1} parent=0 // pred_region
    _
  $region13: #{augment_vflow_forward.1} parent=0 // pred_fallthru
    _
  // Predicated region
  $region14: #{augment_vflow_forward.1} parent=0 // pred_check
    _
  $region15: #{augment_vflow_forward.1} parent=0 // pred_check_branch
    %19 = sbr.rel (0) target = $region17
  $region16: #{augment_vflow_forward.1} parent=0 // pred_region
    _
  $region17: #{augment_vflow_forward.1} parent=0 // pred_fallthru
    _
  %v20 = vld [vmem:[%s0] sm:$0xff]
  %21 = vst [vmem:[%s4] sm:$0xff] %v20
  %v22 = vld [vmem:[%s1] sm:$0xff]
  %24 = vset.pattern.permute.xlu0 0
  %25 = vperm.xlu0 %24, %v22
  %v26 = vpop.permute.xlu0 %25
  %v28 = vsub.f32 %v20, %v26
  %v29 = vmul.f32 %v28, %v28
  %v30 = vld [vmem:[%s2] sm:$0xff]
  %32 = vset.pattern.permute.xlu0 0
  %33 = vperm.xlu0 %32, %v30
  %v34 = vpop.permute.xlu0 %33
  %v36 = vmul.f32 %v29, %v34
  %v37 = vrot.slane %v36, 4
  %v38 = vadd.f32 %v36, %v37
  %v39 = vrot.slane %v38, 2
  %v40 = vadd.f32 %v38, %v39
  %v41 = vrot.slane %v40, 1
  %v42 = vadd.f32 %v40, %v41
  %s43 = sld [smem:[#allocation2]]
  %v44 = vstv %s43
  %v45 = vadd.f32 %v42, %v44
  %46 = vst [vmem:[%s5] sm:$0x1] %v45
  // Predicated region
  $region18: #{augment_vflow_forward.1} parent=0 // pred_check
    _
  $region19: #{augment_vflow_forward.1} parent=0 // pred_check_branch
    %48 = sbr.rel (0) target = $region21
  $region20: #{augment_vflow_forward.1} parent=0 // pred_region
    _
  $region21: #{augment_vflow_forward.1} parent=0 // pred_fallthru
    _
  // Predicated region
  $region22: #{augment_vflow_forward.1} parent=0 // pred_check
    _
  $region23: #{augment_vflow_forward.1} parent=0 // pred_check_branch
    %50 = sbr.rel (0) target = $region25
  $region24: #{augment_vflow_forward.1} parent=0 // pred_region
    _
  $region25: #{augment_vflow_forward.1} parent=0 // pred_fallthru
    _
  // Predicated region
  $region26: #{augment_vflow_forward.1} parent=0 // pred_check
    _
  $region27: #{augment_vflow_forward.1} parent=0 // pred_check_branch
    %52 = sbr.rel (0) target = $region29
  $region28: #{augment_vflow_forward.1} parent=0 // pred_region
    _
  $region29: #{augment_vflow_forward.1} parent=0 // pred_fallthru
    _
  // Predicated region
  $region30: #{augment_vflow_forward.1} parent=0 // pred_check
    _
  $region31: #{augment_vflow_forward.1} parent=0 // pred_check_branch
    %54 = sbr.rel (0) target = $region33
  $region32: #{augment_vflow_forward.1} parent=0 // pred_region
    _
  $region33: #{augment_vflow_forward.1} parent=0 // pred_fallthru
    _

</llo_original>
